<compile_context>
chip_gen: v7x
topology: tpu7x:2x2x1
jax: 0.10.0
libtpu: 0.0.40
codegen_flags: <defaults>
</compile_context>

<pallas_src>
import jax
import jax.numpy as jnp
import numpy as np
from jax.experimental import pallas as pl
from jax.experimental.pallas import tpu as pltpu

LANE = 128      # vreg lane width
SUBLANE = 8     # f32 sublane packing


def _round_up(x, m):
    return ((x + m - 1) // m) * m


def _vmem_capacity_bytes():
    try:
        return int(pltpu.get_tpu_info().vmem_capacity_bytes)
    except Exception:
        return 64 * 1024 * 1024   # conservative (v7x per-TC VMEM)


def _is_dual_tensorcore():
    # Only v7x has 2 TensorCores per chip; on v5e/v6e an extra grid step is a
    # serial loop iteration with no payoff.
    try:
        kind = jax.devices()[0].device_kind.lower()
    except Exception:
        return False
    return "v7" in kind


def _spec(shape, index_map, pipeline_mode=None):
    if pipeline_mode is None:
        return pl.BlockSpec(shape, index_map)
    return pl.BlockSpec(shape, index_map, pipeline_mode=pipeline_mode)


def encoder_kernel(x_ref, w_ref, b_ref, o_ref):
    # Cast x to the (bf16) weight dtype on the VPU, matmul on the MXU with f32
    # accumulation, then bias add + tanh (EUP) in f32, all resident in VMEM.
    x = x_ref[...].astype(w_ref.dtype)
    acc = jnp.dot(x, w_ref[...], preferred_element_type=jnp.float32)
    o_ref[...] = jnp.tanh(acc + b_ref[...]).astype(o_ref.dtype)


def encoder_forward(x, w_t, b, *, max_batch_tile=512, out_dtype=jnp.float32):
    """x: (..., rnn_size); w_t: (rnn_size, hidden) bf16/f32; b: (hidden,) or (1, hidden)."""
    lead = x.shape[:-1]
    R = x.shape[-1]
    Rw, H = w_t.shape
    assert R == Rw, (R, Rw)
    x2 = x.reshape(-1, R)                       # leading-dim merge: metadata only
    B = x2.shape[0]
    b2 = jnp.asarray(b, jnp.float32).reshape(1, H)

    x_bytes = jnp.dtype(x.dtype).itemsize
    w_bytes = jnp.dtype(w_t.dtype).itemsize
    out_bytes = jnp.dtype(out_dtype).itemsize

    cap = _vmem_capacity_bytes()
    budget = int(cap * 0.6)                     # headroom for compiler scratch

    # ---- N tiling: keep the full (K, N) weight resident when it fits --------
    if R * H * w_bytes <= int(budget * 0.4) or H <= 2 * LANE:
        tn, n_tiles = H, 1                      # full-extent block, resident weight
    else:
        tn = max(256, ((int(budget * 0.4) // (R * w_bytes)) // 256) * 256)
        tn = min(tn, _round_up(H, 256))
        n_tiles = pl.cdiv(H, tn)
    # TODO(synk): if K (rnn_size) alone is too big for VMEM, add a K grid axis
    # with an f32 accumulator scratch + pl.when init/finalize.

    # ---- batch tiling --------------------------------------------------------
    tb = min(_round_up(max_batch_tile, SUBLANE), _round_up(B, SUBLANE))

    def _footprint(tb_, tn_, n_tiles_):
        w_buf = 1 if n_tiles_ == 1 else 2       # Buffered(1) when weight is resident
        return (2 * tb_ * R * x_bytes           # double-buffered x tiles
                + 2 * tb_ * tn_ * out_bytes     # double-buffered out tiles
                + w_buf * R * tn_ * w_bytes     # weight
                + 2 * tn_ * 4)                  # bias

    while tb > SUBLANE and _footprint(tb, tn, n_tiles) > budget:
        tb = max(SUBLANE, tb // 2)

    b_tiles = pl.cdiv(B, tb)

    # v7x only: give both TensorCores work when the whole problem is one tile,
    # but keep each half >= 256 rows so the 256-wide MXU / DMA pipe stays full.
    if _is_dual_tensorcore() and b_tiles * n_tiles == 1 and tb >= 512:
        tb //= 2
        b_tiles = pl.cdiv(B, tb)

    grid = (b_tiles, n_tiles)

    vmem_limit = min(max(int(_footprint(tb, tn, n_tiles) * 5 // 4),
                         32 * 1024 * 1024),
                     int(cap * 0.85))

    cost = pl.CostEstimate(
        flops=2 * B * R * H,
        transcendentals=B * H,
        bytes_accessed=(B * R * x_bytes + R * H * w_bytes
                        + H * 4 + B * H * out_bytes),
    )

    def _call(weight_pipeline_mode):
        in_specs = [
            _spec((tb, R), lambda i, j: (i, 0)),                        # x, batch-tiled
            _spec((R, tn), lambda i, j: (0, j), weight_pipeline_mode),  # weight
            _spec((1, tn), lambda i, j: (0, j), weight_pipeline_mode),  # bias
        ]
        return pl.pallas_call(
            encoder_kernel,
            out_shape=jax.ShapeDtypeStruct((B, H), out_dtype),
            grid_spec=pltpu.PrefetchScalarGridSpec(
                num_scalar_prefetch=0,
                grid=grid,
                in_specs=in_specs,
                out_specs=pl.BlockSpec((tb, tn), lambda i, j: (i, j)),
            ),
            compiler_params=pltpu.CompilerParams(
                dimension_semantics=("parallel", "parallel"),
                vmem_limit_bytes=vmem_limit),
            cost_estimate=cost,
        )(x2, w_t, b2)

    if n_tiles == 1:
        # Constant index_map for weight/bias -> single-buffer them.
        try:
            out = _call(pl.Buffered(1))
        except Exception:
            # Fallback for jax versions without single-buffer pipeline_mode.
            out = _call(None)
    else:
        out = _call(None)

    return out.reshape(*lead, H)


def init_params(key, rnn_size, hidden_size):
    """Deterministic init matching nn.Linear + xavier_normal_ on the weight."""
    kw, kb = jax.random.split(key)
    # xavier_normal_: std = gain * sqrt(2 / (fan_in + fan_out)), gain = 1
    std = float(np.sqrt(2.0 / (rnn_size + hidden_size)))
    # PyTorch weight shape is (hidden, rnn_size); we store its transpose,
    # at rest in bf16 (MXU-native, half the HBM/VMEM footprint).
    w = jax.random.normal(kw, (hidden_size, rnn_size), dtype=jnp.float32) * std
    # nn.Linear default bias init: U(-1/sqrt(fan_in), 1/sqrt(fan_in))
    bound = 1.0 / float(np.sqrt(rnn_size))
    b = jax.random.uniform(kb, (hidden_size,), dtype=jnp.float32,
                           minval=-bound, maxval=bound)
    return w.T.astype(jnp.bfloat16), b.reshape(1, hidden_size)


if __name__ == "__main__":
    rnn_size, hidden_size = 32, 64
    batch = 16

    key = jax.random.PRNGKey(0)
    kx, kp = jax.random.split(key)

    x = jax.random.normal(kx, (batch, rnn_size), dtype=jnp.float32)
    w_t, b = init_params(kp, rnn_size, hidden_size)

    out = jax.block_until_ready(encoder_forward(x, w_t, b))

    # Reference with the same bf16 weight/activation storage + f32 accumulation
    # (documented contract; same math as the f32 PyTorch module up to bf16).
    ref_bf16 = jnp.tanh(
        jnp.dot(x.astype(jnp.bfloat16), w_t.astype(jnp.bfloat16),
                preferred_element_type=jnp.float32) + b)
    np.testing.assert_allclose(np.asarray(out), np.asarray(ref_bf16),
                               rtol=1e-2, atol=1e-2)

    # Also check against the exact f32 PyTorch-style math within bf16 tolerance.
    ref_f32 = jnp.tanh(jnp.dot(x, w_t.astype(jnp.float32)) + b)
    np.testing.assert_allclose(np.asarray(out), np.asarray(ref_f32),
                               rtol=3e-2, atol=3e-2)

    print("KERNEL_OK")
</pallas_src>

<mosaic_0001>
module attributes {stable_mosaic.version = 11 : i64} {
  func.func @encoder_kernel(%arg0: i32, %arg1: i32, %arg2: memref<16x32xf32, #tpu.memory_space<vmem>>, %arg3: memref<32x64xbf16, #tpu.memory_space<vmem>>, %arg4: memref<1x64xf32, #tpu.memory_space<vmem>>, %arg5: memref<16x64xf32, #tpu.memory_space<vmem>>) attributes {dimension_semantics = [#tpu.dimension_semantics<parallel>, #tpu.dimension_semantics<parallel>], iteration_bounds = array<i64: 1, 1>, scalar_prefetch = 0 : i64, scratch_operands = 0 : i64, tpu.core_type = #tpu.core_type<tc>, window_params = [{transform_indices = @transform_0, window_bounds = array<i64: 16, 32>}, {pipeline_mode = #tpu.pipeline_mode<synchronous>, transform_indices = @transform_1, window_bounds = array<i64: 32, 64>}, {pipeline_mode = #tpu.pipeline_mode<synchronous>, transform_indices = @transform_2, window_bounds = array<i64: 1, 64>}, {transform_indices = @transform_3, window_bounds = array<i64: 16, 64>}]} {
    %c0 = arith.constant 0 : index
    %c0_0 = arith.constant 0 : index
    %0 = vector.load %arg2[%c0, %c0_0] : memref<16x32xf32, #tpu.memory_space<vmem>>, vector<16x32xf32>
    %1 = arith.truncf %0 : vector<16x32xf32> to vector<16x32xbf16>
    %c0_1 = arith.constant 0 : index
    %c0_2 = arith.constant 0 : index
    %2 = vector.load %arg3[%c0_1, %c0_2] : memref<32x64xbf16, #tpu.memory_space<vmem>>, vector<32x64xbf16>
    %cst = arith.constant dense<0.000000e+00> : vector<16x64xf32>
    %3 = tpu.matmul %1, %2, %cst {dimension_numbers = #tpu.dot_dimension_numbers<[1], [0], [0], [1], [0, 0, 1, 1], [], []>} : vector<16x32xbf16>, vector<32x64xbf16>, vector<16x64xf32> -> vector<16x64xf32>
    %c0_3 = arith.constant 0 : index
    %c0_4 = arith.constant 0 : index
    %4 = vector.load %arg4[%c0_3, %c0_4] : memref<1x64xf32, #tpu.memory_space<vmem>>, vector<1x64xf32>
    %5 = vector.broadcast %4 : vector<1x64xf32> to vector<16x64xf32>
    %6 = arith.addf %3, %5 : vector<16x64xf32>
    %7 = math.tanh %6 : vector<16x64xf32>
    %c0_5 = arith.constant 0 : index
    %c0_6 = arith.constant 0 : index
    %8 = vector.load %arg5[%c0_5, %c0_6] : memref<16x64xf32, #tpu.memory_space<vmem>>, vector<16x64xf32>
    tpu.vector_store %arg5[%c0_5, %c0_6], %7 {strides = array<i32>} : memref<16x64xf32, #tpu.memory_space<vmem>>, vector<16x64xf32>,
    return
  }
  func.func @transform_0(%arg0: i32, %arg1: i32) -> (i32, i32) {
    %c0_i32 = arith.constant 0 : i32
    %c0_i32_0 = arith.constant 0 : i32
    return %arg0, %c0_i32 : i32, i32
  }
  func.func @transform_1(%arg0: i32, %arg1: i32) -> (i32, i32) {
    %c0_i32 = arith.constant 0 : i32
    %c0_i32_0 = arith.constant 0 : i32
    return %c0_i32, %arg1 : i32, i32
  }
  func.func @transform_2(%arg0: i32, %arg1: i32) -> (i32, i32) {
    %c0_i32 = arith.constant 0 : i32
    %c0_i32_0 = arith.constant 0 : i32
    return %c0_i32, %arg1 : i32, i32
  }
  func.func @transform_3(%arg0: i32, %arg1: i32) -> (i32, i32) {
    %c0_i32 = arith.constant 0 : i32
    return %arg0, %arg1 : i32, i32
  }
}

module attributes {stable_mosaic.version = 11 : i64} {
  func.func @encoder_kernel(%arg0: i32, %arg1: i32, %arg2: memref<16x32xf32, #tpu.memory_space<vmem>>, %arg3: memref<32x64xbf16, #tpu.memory_space<vmem>>, %arg4: memref<1x64xf32, #tpu.memory_space<vmem>>, %arg5: memref<16x64xf32, #tpu.memory_space<vmem>>) attributes {dimension_semantics = [#tpu.dimension_semantics<parallel>, #tpu.dimension_semantics<parallel>], iteration_bounds = array<i64: 1, 1>, scalar_prefetch = 0 : i64, scratch_operands = 0 : i64, tpu.core_type = #tpu.core_type<tc>, window_params = [{transform_indices = @transform_0, window_bounds = array<i64: 16, 32>}, {transform_indices = @transform_1, window_bounds = array<i64: 32, 64>}, {transform_indices = @transform_2, window_bounds = array<i64: 1, 64>}, {transform_indices = @transform_3, window_bounds = array<i64: 16, 64>}]} {
    %c0 = arith.constant 0 : index
    %c0_0 = arith.constant 0 : index
    %0 = vector.load %arg2[%c0, %c0_0] : memref<16x32xf32, #tpu.memory_space<vmem>>, vector<16x32xf32>
    %1 = arith.truncf %0 : vector<16x32xf32> to vector<16x32xbf16>
    %c0_1 = arith.constant 0 : index
    %c0_2 = arith.constant 0 : index
    %2 = vector.load %arg3[%c0_1, %c0_2] : memref<32x64xbf16, #tpu.memory_space<vmem>>, vector<32x64xbf16>
    %cst = arith.constant dense<0.000000e+00> : vector<16x64xf32>
    %3 = tpu.matmul %1, %2, %cst {dimension_numbers = #tpu.dot_dimension_numbers<[1], [0], [0], [1], [0, 0, 1, 1], [], []>} : vector<16x32xbf16>, vector<32x64xbf16>, vector<16x64xf32> -> vector<16x64xf32>
    %c0_3 = arith.constant 0 : index
    %c0_4 = arith.constant 0 : index
    %4 = vector.load %arg4[%c0_3, %c0_4] : memref<1x64xf32, #tpu.memory_space<vmem>>, vector<1x64xf32>
    %5 = vector.broadcast %4 : vector<1x64xf32> to vector<16x64xf32>
    %6 = arith.addf %3, %5 : vector<16x64xf32>
    %7 = math.tanh %6 : vector<16x64xf32>
    %c0_5 = arith.constant 0 : index
    %c0_6 = arith.constant 0 : index
    %8 = vector.load %arg5[%c0_5, %c0_6] : memref<16x64xf32, #tpu.memory_space<vmem>>, vector<16x64xf32>
    tpu.vector_store %arg5[%c0_5, %c0_6], %7 {strides = array<i32>} : memref<16x64xf32, #tpu.memory_space<vmem>>, vector<16x64xf32>,
    return
  }
  func.func @transform_0(%arg0: i32, %arg1: i32) -> (i32, i32) {
    %c0_i32 = arith.constant 0 : i32
    %c0_i32_0 = arith.constant 0 : i32
    return %arg0, %c0_i32 : i32, i32
  }
  func.func @transform_1(%arg0: i32, %arg1: i32) -> (i32, i32) {
    %c0_i32 = arith.constant 0 : i32
    %c0_i32_0 = arith.constant 0 : i32
    return %c0_i32, %arg1 : i32, i32
  }
  func.func @transform_2(%arg0: i32, %arg1: i32) -> (i32, i32) {
    %c0_i32 = arith.constant 0 : i32
    %c0_i32_0 = arith.constant 0 : i32
    return %c0_i32, %arg1 : i32, i32
  }
  func.func @transform_3(%arg0: i32, %arg1: i32) -> (i32, i32) {
    %c0_i32 = arith.constant 0 : i32
    return %arg0, %arg1 : i32, i32
  }
}

</mosaic_0001>

<llo_original>
// kernel: tpu_custom_call.1
$region0: #{tpu_custom_call.1}
  #allocation0 [shape = 'u32[]', space=smem, size = 0x4, offset = 0x4, fixed_abs, tag = 'smem constant byte address 0x4 - core index']
  #allocation1 [shape = 'u32[144,128]{1,0:T(1,128)}', space=vmem, size = 0x12000, scoped, tag = 'internal scratch']
  %s0 = inlined_call_operand.hbm [shape: f32[16,32], index: 0, kind: input, shape index: {}]
  %s1 = inlined_call_operand.hbm [shape: bf16[32,64], index: 1, kind: input, shape index: {}]
  %s2 = inlined_call_operand.vmem [shape: f32[1,64], index: 2, kind: input, shape index: {}]
  %s3 = inlined_call_operand.hbm [shape: f32[16,64], index: 3, kind: output, shape index: {}]
  %s4 = sld [smem:[#allocation0]]
  $region30: #{tpu_custom_call.1} parent=0
    _
  %s6 = ssub.s32 1, %s4
  %s7 = scalar_select 0, %s6, %s4
  $region1: #{tpu_custom_call.1} parent=0
    #allocation2 [shape = 'u8[8192]{0}', space=vmem, size = 0x2000, scoped, tag = 'input window, operand 0, single buffered']
    #allocation3 [shape = 's32[1]{0}', space=sflag, size = 0x4, scoped, tag = 'scoped memory for tpu_custom_call.1']
    #allocation4 [shape = 's32[1]{0}', space=sflag, size = 0x4, scoped, tag = 'scoped memory for tpu_custom_call.1']
    #allocation5 [shape = 'u8[8192]{0}', space=vmem, size = 0x2000, scoped, tag = 'input window, operand 1, single buffered']
    #allocation6 [shape = 's32[1]{0}', space=sflag, size = 0x4, scoped, tag = 'scoped memory for tpu_custom_call.1']
    #allocation7 [shape = 'u8[8192]{0}', space=vmem, size = 0x2000, scoped, tag = 'output window, operand 0, single buffered']
    %8 = vsyncpa [#allocation3], 0
    %9 = vsyncpa [#allocation6], 0
    %10 = vsyncpa [#allocation4], 0
    // Predicated region
    $region2: #{tpu_custom_call.1} parent=1 // pred_check
      _
    $region3: #{tpu_custom_call.1} parent=1 // pred_check_branch
      %12 = sbr.rel (0) target = $region5
    $region4: #{tpu_custom_call.1} parent=1 // pred_region
      %s14 = ssub.s32 256, 256
      %15 = vsyncadd [#allocation3], %s14
      %s16 = sshll.u32 [#allocation2], 4
      %s17 = int_to_ptr.vmem [resolvable:$true] %s16
      %22 = dma.hbm_to_vmem [thread:$0]  %s0, 256, %s17, [#allocation3], 128, 128, 8
    $region5: #{tpu_custom_call.1} parent=1 // pred_fallthru
      _
    // Predicated region
    $region6: #{tpu_custom_call.1} parent=1 // pred_check
      _
    $region7: #{tpu_custom_call.1} parent=1 // pred_check_branch
      %24 = sbr.rel (0) target = $region9
    $region8: #{tpu_custom_call.1} parent=1 // pred_region
      %s26 = ssub.s32 256, 256
      %27 = vsyncadd [#allocation6], %s26
      %s28 = sshll.u32 [#allocation5], 4
      %s29 = int_to_ptr.vmem [resolvable:$true] %s28
      %34 = dma.hbm_to_vmem [thread:$0]  %s1, 256, %s29, [#allocation6], 64, 64, 4
    $region9: #{tpu_custom_call.1} parent=1 // pred_fallthru
      _
    // Predicated region
    $region10: #{tpu_custom_call.1} parent=1 // pred_check
      _
    $region11: #{tpu_custom_call.1} parent=1 // pred_check_branch
      %36 = sbr.rel (0) target = $region13
    $region12: #{tpu_custom_call.1} parent=1 // pred_region
      _
    $region13: #{tpu_custom_call.1} parent=1 // pred_fallthru
      _
    // Predicated region
    $region14: #{tpu_custom_call.1} parent=1 // pred_check
      _
    $region15: #{tpu_custom_call.1} parent=1 // pred_check_branch
      %38 = sbr.rel (0) target = $region17
    $region16: #{tpu_custom_call.1} parent=1 // pred_region
      %39 = dma.done [#allocation3], 256
    $region17: #{tpu_custom_call.1} parent=1 // pred_fallthru
      _
    // Predicated region
    $region18: #{tpu_custom_call.1} parent=1 // pred_check
      _
    $region19: #{tpu_custom_call.1} parent=1 // pred_check_branch
      %41 = sbr.rel (0) target = $region21
    $region20: #{tpu_custom_call.1} parent=1 // pred_region
      %42 = dma.done [#allocation6], 256
    $region21: #{tpu_custom_call.1} parent=1 // pred_fallthru
      _
    %v44 = vld [vmem:[#allocation2] sm:$0xff]
    %v45 = vld [vmem:[#allocation2 + $0x8] sm:$0xff]
    %v46 = vpack.c.bf16 %v45, %v44
    %v47 = vld [vmem:[#allocation5] sm:$0xf]
    %v48 = vld [vmem:[#allocation5 + $0x4] sm:$0xf]
    %v49 = vld [vmem:[#allocation5 + $0x8] sm:$0xf]
    %v50 = vld [vmem:[#allocation5 + $0xc] sm:$0xf]
    %v51 = vld [vmem:[%s2] sm:$0x1]
    %v53 = vlaneseq
    %v54 = vshrl.u32 %v53, 7
    %v55 = vsub.s32 0, %v54
    %v56 = vrot.slane %v51, %v55
    %v62 = vunpack.c.l.b16 %v47
    %v63 = vunpack.c.l.b16 %v48
    %v64 = vunpack.c.l.b16 %v49
    %v65 = vunpack.c.l.b16 %v50
    %v66 = vpack.c.b16 %v63, %v62
    %v67 = vpack.c.b16 %v65, %v64
    %vm70 = vcmask 261120
    %v72 = vsel %vm70, %v46, 0
    %74 = vmatprep.subr.bf16.mxu0 0
    %75 = vmatpush1.bf16.msra.mxu0 %v66
    %76 = vmatprep.subr.bf16.mxu0 0
    %77 = vmatpush1.bf16.msra.mxu0 %v67
    %78 = vmatprep.subr.bf16.mxu0 0
    %79 = vmatpush1.bf16.msra.mxu0 0
    %80 = vmatprep.subr.bf16.mxu0 0
    %81 = vmatpush1.bf16.msra.mxu0 0
    %82 = vmatprep.subr.bf16.mxu0 0
    %83 = vmatpush1.bf16.msra.mxu0 0
    %84 = vmatprep.subr.bf16.mxu0 0
    %85 = vmatpush1.bf16.msra.mxu0 0
    %86 = vmatprep.subr.bf16.mxu0 0
    %87 = vmatpush1.bf16.msra.mxu0 0
    %88 = vmatprep.subr.bf16.mxu0 0
    %89 = vmatpush1.bf16.msra.mxu0 0
    %90 = vmatprep.subr.bf16.mxu0 0
    %91 = vmatpush1.bf16.msra.mxu0 0
    %92 = vmatprep.subr.bf16.mxu0 0
    %93 = vmatpush1.bf16.msra.mxu0 0
    %94 = vmatprep.subr.bf16.mxu0 0
    %95 = vmatpush1.bf16.msra.mxu0 0
    %96 = vmatprep.subr.bf16.mxu0 0
    %97 = vmatpush1.bf16.msra.mxu0 0
    %98 = vmatprep.subr.bf16.mxu0 0
    %99 = vmatpush1.bf16.msra.mxu0 0
    %100 = vmatprep.subr.bf16.mxu0 0
    %101 = vmatpush1.bf16.msra.mxu0 0
    %102 = vmatprep.subr.bf16.mxu0 0
    %103 = vmatpush1.bf16.msra.mxu0 0
    %104 = vmatprep.subr.bf16.mxu0 0
    %105 = vmatpush1.bf16.msra.mxu0 0
    %106 = vmatprep.mubr.bf16.mxu0 0
    %107 = vmatmul.mubr.bf16.gmra.mrb[0].mxu0 %v72
    %v108 = vpop.f32.mrb[0].mxu0
    %v109 = vadd.f32 %v56, %v108
    %v110 = vpop.f32.mrb[0].mxu0
    %v111 = vpop.f32.mrb[0].mxu0
    %v112 = vadd.f32 %v56, %v111
    %v113 = vpop.f32.mrb[0].mxu0
    %114 = vdwg.mxu0
    %v115 = vtanh.pop %v109
    %v116 = vtanh.pop %v112
    %vm117 = vcmask 523264
    %118 = vst.msk [vmem:[#allocation7] sm:$0xff] %vm117, %v115
    %119 = vst.msk [vmem:[#allocation7 + $0x8] sm:$0xff] %vm117, %v116
    // Predicated region
    $region22: #{tpu_custom_call.1} parent=1 // pred_check
      _
    $region23: #{tpu_custom_call.1} parent=1 // pred_check_branch
      %121 = sbr.rel (0) target = $region25
    $region24: #{tpu_custom_call.1} parent=1 // pred_region
      %s123 = ssub.s32 256, 256
      %124 = vsyncadd [#allocation4], %s123
      %s125 = sshll.u32 [#allocation7], 4
      %s126 = int_to_ptr.vmem [resolvable:$true] %s125
      %131 = dma.vmem_to_hbm [thread:$0]  %s126, 256, %s3, [#allocation4], 128, 128, 8
    $region25: #{tpu_custom_call.1} parent=1 // pred_fallthru
      _
    // Predicated region
    $region26: #{tpu_custom_call.1} parent=1 // pred_check
      _
    $region27: #{tpu_custom_call.1} parent=1 // pred_check_branch
      %133 = sbr.rel (0) target = $region29
    $region28: #{tpu_custom_call.1} parent=1 // pred_region
      %134 = dma.done [#allocation4], 256
    $region29: #{tpu_custom_call.1} parent=1 // pred_fallthru
      _
    %135 = vsyncpa [#allocation3], 1
    %136 = vsyncpa [#allocation6], 1
    %137 = vsyncpa [#allocation4], 1

// kernel: tpu_custom_call.1
$region0: #{tpu_custom_call.1}
  #allocation0 [shape = 'u32[]', space=smem, size = 0x4, offset = 0x4, fixed_abs, tag = 'smem constant byte address 0x4 - core index']
  #allocation1 [shape = 'u32[144,128]{1,0:T(1,128)}', space=vmem, size = 0x12000, scoped, tag = 'internal scratch']
  %s0 = inlined_call_operand.hbm [shape: f32[16,32], index: 0, kind: input, shape index: {}]
  %s1 = inlined_call_operand.hbm [shape: bf16[32,64], index: 1, kind: input, shape index: {}]
  %s2 = inlined_call_operand.vmem [shape: f32[1,64], index: 2, kind: input, shape index: {}]
  %s3 = inlined_call_operand.hbm [shape: f32[16,64], index: 3, kind: output, shape index: {}]
  %s4 = sld [smem:[#allocation0]]
  $region30: #{tpu_custom_call.1} parent=0
    _
  %s6 = ssub.s32 1, %s4
  %s7 = scalar_select 0, %s6, %s4
  $region1: #{tpu_custom_call.1} parent=0
    #allocation2 [shape = 'u8[8192]{0}', space=vmem, size = 0x2000, scoped, tag = 'input window, operand 0, single buffered']
    #allocation3 [shape = 's32[1]{0}', space=sflag, size = 0x4, scoped, tag = 'scoped memory for tpu_custom_call.1']
    #allocation4 [shape = 's32[1]{0}', space=sflag, size = 0x4, scoped, tag = 'scoped memory for tpu_custom_call.1']
    #allocation5 [shape = 'u8[8192]{0}', space=vmem, size = 0x2000, scoped, tag = 'input window, operand 1, single buffered']
    #allocation6 [shape = 's32[1]{0}', space=sflag, size = 0x4, scoped, tag = 'scoped memory for tpu_custom_call.1']
    #allocation7 [shape = 'u8[8192]{0}', space=vmem, size = 0x2000, scoped, tag = 'output window, operand 0, single buffered']
    %8 = vsyncpa [#allocation3], 0
    %9 = vsyncpa [#allocation6], 0
    %10 = vsyncpa [#allocation4], 0
    // Predicated region
    $region2: #{tpu_custom_call.1} parent=1 // pred_check
      _
    $region3: #{tpu_custom_call.1} parent=1 // pred_check_branch
      %12 = sbr.rel (0) target = $region5
    $region4: #{tpu_custom_call.1} parent=1 // pred_region
      %s14 = ssub.s32 256, 256
      %15 = vsyncadd [#allocation3], %s14
      %s16 = sshll.u32 [#allocation2], 4
      %s17 = int_to_ptr.vmem [resolvable:$true] %s16
      %22 = dma.hbm_to_vmem [thread:$0]  %s0, 256, %s17, [#allocation3], 128, 128, 8
    $region5: #{tpu_custom_call.1} parent=1 // pred_fallthru
      _
    // Predicated region
    $region6: #{tpu_custom_call.1} parent=1 // pred_check
      _
    $region7: #{tpu_custom_call.1} parent=1 // pred_check_branch
      %24 = sbr.rel (0) target = $region9
    $region8: #{tpu_custom_call.1} parent=1 // pred_region
      %s26 = ssub.s32 256, 256
      %27 = vsyncadd [#allocation6], %s26
      %s28 = sshll.u32 [#allocation5], 4
      %s29 = int_to_ptr.vmem [resolvable:$true] %s28
      %34 = dma.hbm_to_vmem [thread:$0]  %s1, 256, %s29, [#allocation6], 64, 64, 4
    $region9: #{tpu_custom_call.1} parent=1 // pred_fallthru
      _
    // Predicated region
    $region10: #{tpu_custom_call.1} parent=1 // pred_check
      _
    $region11: #{tpu_custom_call.1} parent=1 // pred_check_branch
      %36 = sbr.rel (0) target = $region13
    $region12: #{tpu_custom_call.1} parent=1 // pred_region
      _
    $region13: #{tpu_custom_call.1} parent=1 // pred_fallthru
      _
    // Predicated region
    $region14: #{tpu_custom_call.1} parent=1 // pred_check
      _
    $region15: #{tpu_custom_call.1} parent=1 // pred_check_branch
      %38 = sbr.rel (0) target = $region17
    $region16: #{tpu_custom_call.1} parent=1 // pred_region
      %39 = dma.done [#allocation3], 256
    $region17: #{tpu_custom_call.1} parent=1 // pred_fallthru
      _
    // Predicated region
    $region18: #{tpu_custom_call.1} parent=1 // pred_check
      _
    $region19: #{tpu_custom_call.1} parent=1 // pred_check_branch
      %41 = sbr.rel (0) target = $region21
    $region20: #{tpu_custom_call.1} parent=1 // pred_region
      %42 = dma.done [#allocation6], 256
    $region21: #{tpu_custom_call.1} parent=1 // pred_fallthru
      _
    %v44 = vld [vmem:[#allocation2] sm:$0xff]
    %v45 = vld [vmem:[#allocation2 + $0x8] sm:$0xff]
    %v46 = vpack.c.bf16 %v45, %v44
    %v47 = vld [vmem:[#allocation5] sm:$0xf]
    %v48 = vld [vmem:[#allocation5 + $0x4] sm:$0xf]
    %v49 = vld [vmem:[#allocation5 + $0x8] sm:$0xf]
    %v50 = vld [vmem:[#allocation5 + $0xc] sm:$0xf]
    %v51 = vld [vmem:[%s2] sm:$0x1]
    %v53 = vlaneseq
    %v54 = vshrl.u32 %v53, 7
    %v55 = vsub.s32 0, %v54
    %v56 = vrot.slane %v51, %v55
    %v62 = vunpack.c.l.b16 %v47
    %v63 = vunpack.c.l.b16 %v48
    %v64 = vunpack.c.l.b16 %v49
    %v65 = vunpack.c.l.b16 %v50
    %v66 = vpack.c.b16 %v63, %v62
    %v67 = vpack.c.b16 %v65, %v64
    %vm70 = vcmask 261120
    %v72 = vsel %vm70, %v46, 0
    %74 = vmatprep.subr.bf16.mxu0 0
    %75 = vmatpush1.bf16.msra.mxu0 %v66
    %76 = vmatprep.subr.bf16.mxu0 0
    %77 = vmatpush1.bf16.msra.mxu0 %v67
    %78 = vmatprep.subr.bf16.mxu0 0
    %79 = vmatpush1.bf16.msra.mxu0 0
    %80 = vmatprep.subr.bf16.mxu0 0
    %81 = vmatpush1.bf16.msra.mxu0 0
    %82 = vmatprep.subr.bf16.mxu0 0
    %83 = vmatpush1.bf16.msra.mxu0 0
    %84 = vmatprep.subr.bf16.mxu0 0
    %85 = vmatpush1.bf16.msra.mxu0 0
    %86 = vmatprep.subr.bf16.mxu0 0
    %87 = vmatpush1.bf16.msra.mxu0 0
    %88 = vmatprep.subr.bf16.mxu0 0
    %89 = vmatpush1.bf16.msra.mxu0 0
    %90 = vmatprep.subr.bf16.mxu0 0
    %91 = vmatpush1.bf16.msra.mxu0 0
    %92 = vmatprep.subr.bf16.mxu0 0
    %93 = vmatpush1.bf16.msra.mxu0 0
    %94 = vmatprep.subr.bf16.mxu0 0
    %95 = vmatpush1.bf16.msra.mxu0 0
    %96 = vmatprep.subr.bf16.mxu0 0
    %97 = vmatpush1.bf16.msra.mxu0 0
    %98 = vmatprep.subr.bf16.mxu0 0
    %99 = vmatpush1.bf16.msra.mxu0 0
    %100 = vmatprep.subr.bf16.mxu0 0
    %101 = vmatpush1.bf16.msra.mxu0 0
    %102 = vmatprep.subr.bf16.mxu0 0
    %103 = vmatpush1.bf16.msra.mxu0 0
    %104 = vmatprep.subr.bf16.mxu0 0
    %105 = vmatpush1.bf16.msra.mxu0 0
    %106 = vmatprep.mubr.bf16.mxu0 0
    %107 = vmatmul.mubr.bf16.gmra.mrb[0].mxu0 %v72
    %v108 = vpop.f32.mrb[0].mxu0
    %v109 = vadd.f32 %v56, %v108
    %v110 = vpop.f32.mrb[0].mxu0
    %v111 = vpop.f32.mrb[0].mxu0
    %v112 = vadd.f32 %v56, %v111
    %v113 = vpop.f32.mrb[0].mxu0
    %114 = vdwg.mxu0
    %v115 = vtanh.pop %v109
    %v116 = vtanh.pop %v112
    %vm117 = vcmask 523264
    %118 = vst.msk [vmem:[#allocation7] sm:$0xff] %vm117, %v115
    %119 = vst.msk [vmem:[#allocation7 + $0x8] sm:$0xff] %vm117, %v116
    // Predicated region
    $region22: #{tpu_custom_call.1} parent=1 // pred_check
      _
    $region23: #{tpu_custom_call.1} parent=1 // pred_check_branch
      %121 = sbr.rel (0) target = $region25
    $region24: #{tpu_custom_call.1} parent=1 // pred_region
      %s123 = ssub.s32 256, 256
      %124 = vsyncadd [#allocation4], %s123
      %s125 = sshll.u32 [#allocation7], 4
      %s126 = int_to_ptr.vmem [resolvable:$true] %s125
      %131 = dma.vmem_to_hbm [thread:$0]  %s126, 256, %s3, [#allocation4], 128, 128, 8
    $region25: #{tpu_custom_call.1} parent=1 // pred_fallthru
      _
    // Predicated region
    $region26: #{tpu_custom_call.1} parent=1 // pred_check
      _
    $region27: #{tpu_custom_call.1} parent=1 // pred_check_branch
      %133 = sbr.rel (0) target = $region29
    $region28: #{tpu_custom_call.1} parent=1 // pred_region
      %134 = dma.done [#allocation4], 256
    $region29: #{tpu_custom_call.1} parent=1 // pred_fallthru
      _
    %135 = vsyncpa [#allocation3], 1
    %136 = vsyncpa [#allocation6], 1
    %137 = vsyncpa [#allocation4], 1

</llo_original>
